<compile_context>
chip_gen: v7x
topology: tpu7x:2x2x1
jax: 0.10.0
libtpu: 0.0.40
codegen_flags: <defaults>
</compile_context>

<pallas_src>
import functools

import jax
import jax.numpy as jnp
from jax.experimental import pallas as pl
from jax.experimental.pallas import tpu as pltpu


# Lane-dense tiling: last dim is a large multiple of 128 -> wide unmasked
# vector stores and few, long DMA descriptors per block.
_LANES = 8192
_BLOCK_ROWS = 64
_BLOCK_ELEMS = _BLOCK_ROWS * _LANES  # 524288 elements (2 MiB at int32)


def _add_offset_kernel(x_ref, o_ref, *, offset):
    # Pure VPU elementwise add; offset is a traced-in constant.
    o_ref[...] = x_ref[...] + offset


def fake_process_forward(idx: jax.Array, offset: int) -> jax.Array:
    """Pallas equivalent of FakeProcess.forward: returns idx + offset."""
    orig_shape = idx.shape
    dtype = idx.dtype
    n_elems = idx.size
    kernel = functools.partial(_add_offset_kernel, offset=offset)

    if n_elems <= _BLOCK_ELEMS:
        # Fast path for small frames: one gridless whole-array VMEM block.
        return pl.pallas_call(
            kernel,
            out_shape=jax.ShapeDtypeStruct(orig_shape, dtype),
            input_output_aliases={0: 0},
        )(idx)

    # Large-frame path: lane-dense 2-D view, multi-MiB tiles, parallel grid.
    flat = idx.reshape(-1)
    pad = (-n_elems) % _BLOCK_ELEMS
    if pad:
        flat = jnp.pad(flat, (0, pad))
    rows = flat.size // _LANES
    x2d = flat.reshape(rows, _LANES)
    grid = (rows // _BLOCK_ROWS,)

    out2d = pl.pallas_call(
        kernel,
        out_shape=jax.ShapeDtypeStruct((rows, _LANES), dtype),
        grid=grid,
        in_specs=[pl.BlockSpec((_BLOCK_ROWS, _LANES), lambda i: (i, 0))],
        out_specs=pl.BlockSpec((_BLOCK_ROWS, _LANES), lambda i: (i, 0)),
        input_output_aliases={0: 0},
        compiler_params=pltpu.CompilerParams(
            dimension_semantics=("parallel",),
        ),
        cost_estimate=pl.CostEstimate(
            flops=n_elems,
            transcendentals=0,
            bytes_accessed=2 * idx.nbytes,
        ),
    )(x2d)

    out = out2d.reshape(-1)
    if pad:
        out = out[:n_elems]
    return out.reshape(orig_shape)


class FakeFrame:
    def __init__(self, idx):
        self.idx = idx


class FakeProcess:
    """JAX/Pallas port of the PyTorch FakeProcess module."""

    def __init__(self, offset: int):
        self.offset = offset  # static "parameter" from __init__

    def forward(self, frame: FakeFrame) -> FakeFrame:
        frame.idx = fake_process_forward(frame.idx, self.offset)
        return frame


if __name__ == "__main__":
    key = jax.random.PRNGKey(0)
    offset = 3
    proc = FakeProcess(offset)

    # 1) Small frame (unit-test sized): exercises the gridless fast path.
    k1, k2 = jax.random.split(key)
    idx_small = jax.random.randint(k1, (8, 128), minval=0, maxval=100,
                                   dtype=jnp.int32)
    out_small = jax.block_until_ready(proc.forward(FakeFrame(idx_small)).idx)
    assert out_small.shape == idx_small.shape
    assert out_small.dtype == idx_small.dtype
    assert bool(jnp.all(out_small == idx_small + offset))

    # 2) Larger frame: exercises the lane-dense tiled path (with padding).
    idx_big = jax.random.randint(k2, (640, 1024), minval=0, maxval=100,
                                 dtype=jnp.int32)
    out_big = jax.block_until_ready(proc.forward(FakeFrame(idx_big)).idx)
    assert out_big.shape == idx_big.shape
    assert out_big.dtype == idx_big.dtype
    assert bool(jnp.all(out_big == idx_big + offset))

    print("KERNEL_OK")
</pallas_src>

<mosaic_0001>
module attributes {stable_mosaic.version = 11 : i64} {
  func.func @_add_offset_kernel(%arg0: memref<8x128xi32, #tpu.memory_space<vmem>>, %arg1: memref<8x128xi32, #tpu.memory_space<vmem>>) attributes {dimension_semantics = [], scalar_prefetch = 0 : i64, scratch_operands = 0 : i64, tpu.core_type = #tpu.core_type<tc>} {
    %c0 = arith.constant 0 : index
    %c0_0 = arith.constant 0 : index
    %0 = vector.load %arg0[%c0, %c0_0] : memref<8x128xi32, #tpu.memory_space<vmem>>, vector<8x128xi32>
    %c3_i32 = arith.constant 3 : i32
    %1 = vector.broadcast %c3_i32 : i32 to vector<8x128xi32>
    %2 = arith.addi %0, %1 : vector<8x128xi32>
    %c0_1 = arith.constant 0 : index
    %c0_2 = arith.constant 0 : index
    %3 = vector.load %arg1[%c0_1, %c0_2] : memref<8x128xi32, #tpu.memory_space<vmem>>, vector<8x128xi32>
    tpu.vector_store %arg1[%c0_1, %c0_2], %2 {strides = array<i32>} : memref<8x128xi32, #tpu.memory_space<vmem>>, vector<8x128xi32>,
    return
  }
}

</mosaic_0001>

<llo_original>
// kernel: tpu_custom_call.1
$region0: #{tpu_custom_call.1}
  #allocation0 [shape = 'u32[]', space=smem, size = 0x4, offset = 0x4, fixed_abs, tag = 'smem constant byte address 0x4 - core index']
  #allocation1 [shape = 'u32[144,128]{1,0:T(1,128)}', space=vmem, size = 0x12000, scoped, tag = 'internal scratch']
  %s0 = inlined_call_operand.hbm [shape: s32[8,128], index: 0, kind: input, shape index: {}, may-alias: {0,1}]
  %s1 = inlined_call_operand.hbm [shape: s32[8,128], index: 1, kind: output, shape index: {}, may-alias: {0,1}]
  %s2 = sld [smem:[#allocation0]]
  $region18: #{tpu_custom_call.1} parent=0
    _
  %s4 = ssub.s32 1, %s2
  %s5 = scalar_select 0, %s4, %s2
  $region1: #{tpu_custom_call.1} parent=0
    #allocation2 [shape = 'u8[4096]{0}', space=vmem, size = 0x1000, scoped, tag = 'input window, operand 0, single buffered']
    #allocation3 [shape = 's32[1]{0}', space=sflag, size = 0x4, scoped, tag = 'scoped memory for tpu_custom_call.1']
    #allocation4 [shape = 's32[1]{0}', space=sflag, size = 0x4, scoped, tag = 'scoped memory for tpu_custom_call.1']
    #allocation5 [shape = 'u8[4096]{0}', space=vmem, size = 0x1000, scoped, tag = 'output window, operand 0, single buffered']
    %6 = vsyncpa [#allocation3], 0
    %7 = vsyncpa [#allocation4], 0
    // Predicated region
    $region2: #{tpu_custom_call.1} parent=1 // pred_check
      _
    $region3: #{tpu_custom_call.1} parent=1 // pred_check_branch
      %9 = sbr.rel (0) target = $region5
    $region4: #{tpu_custom_call.1} parent=1 // pred_region
      %s11 = ssub.s32 128, 128
      %12 = vsyncadd [#allocation3], %s11
      %s14 = sshll.u32 [#allocation2], 4
      %s15 = int_to_ptr.vmem [resolvable:$true] %s14
      %17 = dma.hbm_to_vmem [thread:$0]  %s0, 128, %s15, [#allocation3]
    $region5: #{tpu_custom_call.1} parent=1 // pred_fallthru
      _
    // Predicated region
    $region6: #{tpu_custom_call.1} parent=1 // pred_check
      _
    $region7: #{tpu_custom_call.1} parent=1 // pred_check_branch
      %19 = sbr.rel (0) target = $region9
    $region8: #{tpu_custom_call.1} parent=1 // pred_region
      %20 = dma.done [#allocation3], 128
    $region9: #{tpu_custom_call.1} parent=1 // pred_fallthru
      _
    %v21 = vld [vmem:[#allocation2] sm:$0xff]
    %v22 = vadd.s32 %v21, 3
    %23 = vst [vmem:[#allocation5] sm:$0xff] %v22
    // Predicated region
    $region10: #{tpu_custom_call.1} parent=1 // pred_check
      _
    $region11: #{tpu_custom_call.1} parent=1 // pred_check_branch
      %25 = sbr.rel (0) target = $region13
    $region12: #{tpu_custom_call.1} parent=1 // pred_region
      %s27 = ssub.s32 128, 128
      %28 = vsyncadd [#allocation4], %s27
      %s30 = sshll.u32 [#allocation5], 4
      %s31 = int_to_ptr.vmem [resolvable:$true] %s30
      %33 = dma.vmem_to_hbm [thread:$0]  %s31, 128, %s1, [#allocation4]
    $region13: #{tpu_custom_call.1} parent=1 // pred_fallthru
      _
    // Predicated region
    $region14: #{tpu_custom_call.1} parent=1 // pred_check
      _
    $region15: #{tpu_custom_call.1} parent=1 // pred_check_branch
      %35 = sbr.rel (0) target = $region17
    $region16: #{tpu_custom_call.1} parent=1 // pred_region
      %36 = dma.done [#allocation4], 128
    $region17: #{tpu_custom_call.1} parent=1 // pred_fallthru
      _
    %37 = vsyncpa [#allocation3], 1
    %38 = vsyncpa [#allocation4], 1

</llo_original>
